<compile_context>
chip_gen: v6e
topology: v6e:2x2x1
jax: 0.10.0
libtpu: 0.0.40
codegen_flags: <defaults>
</compile_context>

<pallas_src>
import functools

import jax
import jax.numpy as jnp
from jax.experimental import pallas as pl
from jax.experimental.pallas import tpu as pltpu

_BN_EPS = 1e-5
_LANE = 128
_SUBLANE = 8
_MAX_TILE_N = 1024                     # rows per grid step; small VMEM footprint
_VMEM_LIMIT = 32 * 1024 * 1024         # explicit, safe on v5e/v6e/v7x


def _round_up(n, m):
    return ((n + m - 1) // m) * m


# ------------------------------------------------------------------ kernels

def _stats_kernel(x_ref, w1_ref, stats_ref):
    """Accumulate per-hidden-feature sum and sum-of-squares of h = x @ W1."""
    @pl.when(pl.program_id(0) == 0)
    def _():
        stats_ref[...] = jnp.zeros_like(stats_ref)

    # MXU matmul in the input dtype (bf16 fast path if inputs are bf16),
    # f32 accumulation.  h never leaves VMEM.
    h = jnp.dot(x_ref[...], w1_ref[...], preferred_element_type=jnp.float32)

    # stats rows: 0 = sum, 1 = sum of squares (rows 2..7 are alignment padding).
    stats_ref[0:1, :] += jnp.sum(h, axis=0, keepdims=True)
    stats_ref[1:2, :] += jnp.sum(h * h, axis=0, keepdims=True)


def _fwd_kernel(x_ref, stats_ref, gamma_ref, beta_ref, w1_ref, w2_ref, o_ref,
                *, inv_n):
    """out_tile = relu(x_tile @ (W1 * scale) + shift) @ W2 (BN folded)."""
    mean = stats_ref[0:1, :] * inv_n                       # (1, Hp) f32
    var = jnp.maximum(stats_ref[1:2, :] * inv_n - mean * mean, 0.0)
    inv_std = jax.lax.rsqrt(var + _BN_EPS)                 # EUP slot
    scale = gamma_ref[...] * inv_std                       # (1, Hp)
    shift = beta_ref[...] - mean * scale

    # Fold the per-feature BN scale into the (tiny) first-layer weights so the
    # per-element work on the (tile_n, Hp) hidden block is only add + relu.
    w1s = (w1_ref[...].astype(jnp.float32) * scale).astype(x_ref.dtype)
    h = jnp.dot(x_ref[...], w1s, preferred_element_type=jnp.float32) + shift
    h = jnp.maximum(h, 0.0)                                # ReLU
    out = jnp.dot(h.astype(w2_ref.dtype), w2_ref[...],
                  preferred_element_type=jnp.float32)
    o_ref[...] = out.astype(o_ref.dtype)


# ------------------------------------------------------------------ wrappers

def prepare_mlp_params(w1, gamma, beta, w2, compute_dtype=jnp.float32):
    """One-time parameter prep: transpose to (in, out), pad features to 128, cast.

    w1: (H, Din) PyTorch Linear weight; w2: (Dout, H); gamma/beta: (H,).
    """
    H, _ = w1.shape
    Dout = w2.shape[0]
    Hp = _round_up(H, _LANE)
    Doutp = _round_up(Dout, _LANE)

    w1_t = jnp.pad(jnp.asarray(w1, compute_dtype).T, ((0, 0), (0, Hp - H)))
    w2_t = jnp.pad(jnp.asarray(w2, compute_dtype).T,
                   ((0, Hp - H), (0, Doutp - Dout)))
    gamma_p = jnp.pad(jnp.asarray(gamma, jnp.float32).reshape(1, H),
                      ((0, 0), (0, Hp - H)))
    beta_p = jnp.pad(jnp.asarray(beta, jnp.float32).reshape(1, H),
                     ((0, 0), (0, Hp - H)))
    return dict(w1=w1_t, gamma=gamma_p, beta=beta_p, w2=w2_t,
                hidden=H, out=Dout, dtype=compute_dtype)


def mlp_forward(x, params):
    """x: (N, Din). Returns (N, Dout) in x's dtype."""
    N, Din = x.shape
    Hp = params["w1"].shape[1]
    Doutp = params["w2"].shape[1]
    Dout = params["out"]
    cdt = params["dtype"]
    out_dtype = x.dtype

    tile_n = min(_MAX_TILE_N, _round_up(N, _SUBLANE))
    n_pad = _round_up(N, tile_n)
    n_tiles = n_pad // tile_n

    # Zero row padding is exact: zero rows contribute 0 to the BN sums and the
    # final padded rows/cols are sliced away below.
    x_p = jnp.pad(jnp.asarray(x, cdt), ((0, n_pad - N), (0, 0)))

    # ---- phase 1: batch statistics of h = x @ W1 (stats only; 4 KiB output) --
    stats = pl.pallas_call(
        _stats_kernel,
        grid=(n_tiles,),
        in_specs=[
            pl.BlockSpec((tile_n, Din), lambda i: (i, 0)),     # x tile
            pl.BlockSpec((Din, Hp), lambda i: (0, 0)),         # W1, resident
        ],
        out_specs=pl.BlockSpec((_SUBLANE, Hp), lambda i: (0, 0)),  # accumulator
        out_shape=jax.ShapeDtypeStruct((_SUBLANE, Hp), jnp.float32),
        compiler_params=pltpu.CompilerParams(
            dimension_semantics=("arbitrary",),                # coupled by acc
            vmem_limit_bytes=_VMEM_LIMIT),
    )(x_p, params["w1"])

    # ---- phase 2: recompute x @ W1 with BN folded in, ReLU, second matmul ----
    out_p = pl.pallas_call(
        functools.partial(_fwd_kernel, inv_n=1.0 / N),         # biased variance
        grid=(n_tiles,),
        in_specs=[
            pl.BlockSpec((tile_n, Din), lambda i: (i, 0)),     # x tile
            pl.BlockSpec((_SUBLANE, Hp), lambda i: (0, 0)),    # stats, resident
            pl.BlockSpec((1, Hp), lambda i: (0, 0)),           # gamma, resident
            pl.BlockSpec((1, Hp), lambda i: (0, 0)),           # beta, resident
            pl.BlockSpec((Din, Hp), lambda i: (0, 0)),         # W1, resident
            pl.BlockSpec((Hp, Doutp), lambda i: (0, 0)),       # W2, resident
        ],
        out_specs=pl.BlockSpec((tile_n, Doutp), lambda i: (i, 0)),
        out_shape=jax.ShapeDtypeStruct((n_pad, Doutp), out_dtype),
        compiler_params=pltpu.CompilerParams(
            dimension_semantics=("parallel",),                 # independent tiles
            vmem_limit_bytes=_VMEM_LIMIT),
    )(x_p, stats, params["gamma"], params["beta"], params["w1"], params["w2"])

    return out_p[:N, :Dout]


def mlp_reference(x, w1, gamma, beta, w2):
    h = x @ w1.T
    mean = jnp.mean(h, axis=0, keepdims=True)
    var = jnp.mean((h - mean) ** 2, axis=0, keepdims=True)
    h = (h - mean) / jnp.sqrt(var + _BN_EPS) * gamma + beta
    h = jnp.maximum(h, 0.0)
    return h @ w2.T


if __name__ == "__main__":
    # Shapes consistent with MLP(input_dim=16, hidden_dim=32, output_dim=16).
    Din, H, Dout = 16, 32, 16

    key = jax.random.PRNGKey(0)
    kx, k1, k2, kg, kb, kx2 = jax.random.split(key, 6)

    w1 = jax.random.normal(k1, (H, Din), jnp.float32) * (1.0 / jnp.sqrt(Din))
    w2 = jax.random.normal(k2, (Dout, H), jnp.float32) * (1.0 / jnp.sqrt(H))
    gamma = 1.0 + 0.1 * jax.random.normal(kg, (H,), jnp.float32)
    beta = 0.1 * jax.random.normal(kb, (H,), jnp.float32)

    params_f32 = prepare_mlp_params(w1, gamma, beta, w2, jnp.float32)

    # Small batch (single tile).
    x = jax.random.normal(kx, (8, Din), jnp.float32)
    out = jax.block_until_ready(mlp_forward(x, params_f32))
    ref = mlp_reference(x, w1, gamma, beta, w2)
    assert out.shape == (8, Dout)
    assert jnp.allclose(out, ref, atol=2e-3, rtol=2e-3), \
        float(jnp.max(jnp.abs(out - ref)))

    # Larger batch: exercises multi-tile two-phase BN stats + padded rows.
    x2 = jax.random.normal(kx2, (2500, Din), jnp.float32)
    out2 = jax.block_until_ready(mlp_forward(x2, params_f32))
    ref2 = mlp_reference(x2, w1, gamma, beta, w2)
    assert out2.shape == (2500, Dout)
    assert jnp.allclose(out2, ref2, atol=2e-3, rtol=2e-3), \
        float(jnp.max(jnp.abs(out2 - ref2)))

    # bf16 matmul operands (f32 accumulation + f32 BN math) — smoke check
    # against the f32 reference with a precision-appropriate metric.
    params_bf16 = prepare_mlp_params(w1, gamma, beta, w2, jnp.bfloat16)
    out3 = jax.block_until_ready(mlp_forward(x2.astype(jnp.bfloat16), params_bf16))
    rel_err = (jnp.linalg.norm(out3.astype(jnp.float32) - ref2)
               / jnp.linalg.norm(ref2))
    assert float(rel_err) < 5e-2, float(rel_err)

    print("KERNEL_OK")
</pallas_src>

<mosaic_0001>
module attributes {stable_mosaic.version = 11 : i64} {
  func.func @_stats_kernel(%arg0: i32, %arg1: memref<8x16xf32, #tpu.memory_space<vmem>>, %arg2: memref<16x128xf32, #tpu.memory_space<vmem>>, %arg3: memref<8x128xf32, #tpu.memory_space<vmem>>) attributes {dimension_semantics = [#tpu.dimension_semantics<arbitrary>], iteration_bounds = array<i64: 1>, scalar_prefetch = 0 : i64, scratch_operands = 0 : i64, tpu.core_type = #tpu.core_type<tc>, window_params = [{transform_indices = @transform_0, window_bounds = array<i64: 8, 16>}, {pipeline_mode = #tpu.pipeline_mode<synchronous>, transform_indices = @transform_1, window_bounds = array<i64: 16, 128>}, {pipeline_mode = #tpu.pipeline_mode<synchronous>, transform_indices = @transform_2, window_bounds = array<i64: 8, 128>}]} {
    %c0_i32 = arith.constant 0 : i32
    %0 = arith.cmpi eq, %arg0, %c0_i32 : i32
    %1 = arith.extui %0 : i1 to i32
    %c0_i32_0 = arith.constant 0 : i32
    %2 = arith.cmpi ne, %1, %c0_i32_0 : i32
    scf.if %2 {
      %cst_13 = arith.constant 0.000000e+00 : f32
      %17 = vector.broadcast %cst_13 : f32 to vector<8x128xf32>
      %c0_14 = arith.constant 0 : index
      %c0_15 = arith.constant 0 : index
      %18 = vector.load %arg3[%c0_14, %c0_15] : memref<8x128xf32, #tpu.memory_space<vmem>>, vector<8x128xf32>
      tpu.vector_store %arg3[%c0_14, %c0_15], %17 {strides = array<i32>} : memref<8x128xf32, #tpu.memory_space<vmem>>, vector<8x128xf32>,
    } else {
    }
    %c0 = arith.constant 0 : index
    %c0_1 = arith.constant 0 : index
    %3 = vector.load %arg1[%c0, %c0_1] : memref<8x16xf32, #tpu.memory_space<vmem>>, vector<8x16xf32>
    %c0_2 = arith.constant 0 : index
    %c0_3 = arith.constant 0 : index
    %4 = vector.load %arg2[%c0_2, %c0_3] : memref<16x128xf32, #tpu.memory_space<vmem>>, vector<16x128xf32>
    %cst = arith.constant dense<0.000000e+00> : vector<8x128xf32>
    %5 = tpu.matmul %3, %4, %cst {dimension_numbers = #tpu.dot_dimension_numbers<[1], [0], [0], [1], [0, 0, 1, 1], [], []>} : vector<8x16xf32>, vector<16x128xf32>, vector<8x128xf32> -> vector<8x128xf32>
    %c0_4 = arith.constant 0 : index
    %c0_5 = arith.constant 0 : index
    %6 = vector.load %arg3[%c0_4, %c0_5] : memref<8x128xf32, #tpu.memory_space<vmem>>, vector<1x128xf32>
    %cst_6 = arith.constant dense<0.000000e+00> : vector<128xf32>
    %7 = vector.multi_reduction <add>, %5, %cst_6 [0] : vector<8x128xf32> to vector<128xf32>
    %8 = vector.shape_cast %7 : vector<128xf32> to vector<1x128xf32>
    %9 = arith.addf %6, %8 : vector<1x128xf32>
    %c0_7 = arith.constant 0 : index
    %c0_8 = arith.constant 0 : index
    %10 = vector.load %arg3[%c0_7, %c0_8] : memref<8x128xf32, #tpu.memory_space<vmem>>, vector<1x128xf32>
    tpu.vector_store %arg3[%c0_7, %c0_8], %9 {strides = array<i32>} : memref<8x128xf32, #tpu.memory_space<vmem>>, vector<1x128xf32>,
    %c1 = arith.constant 1 : index
    %c0_9 = arith.constant 0 : index
    %11 = vector.load %arg3[%c1, %c0_9] : memref<8x128xf32, #tpu.memory_space<vmem>>, vector<1x128xf32>
    %12 = arith.mulf %5, %5 : vector<8x128xf32>
    %cst_10 = arith.constant dense<0.000000e+00> : vector<128xf32>
    %13 = vector.multi_reduction <add>, %12, %cst_10 [0] : vector<8x128xf32> to vector<128xf32>
    %14 = vector.shape_cast %13 : vector<128xf32> to vector<1x128xf32>
    %15 = arith.addf %11, %14 : vector<1x128xf32>
    %c1_11 = arith.constant 1 : index
    %c0_12 = arith.constant 0 : index
    %16 = vector.load %arg3[%c1_11, %c0_12] : memref<8x128xf32, #tpu.memory_space<vmem>>, vector<1x128xf32>
    tpu.vector_store %arg3[%c1_11, %c0_12], %15 {strides = array<i32>} : memref<8x128xf32, #tpu.memory_space<vmem>>, vector<1x128xf32>,
    return
  }
  func.func @transform_0(%arg0: i32) -> (i32, i32) {
    %c0_i32 = arith.constant 0 : i32
    %c0_i32_0 = arith.constant 0 : i32
    return %arg0, %c0_i32 : i32, i32
  }
  func.func @transform_1(%arg0: i32) -> (i32, i32) {
    %c0_i32 = arith.constant 0 : i32
    %c0_i32_0 = arith.constant 0 : i32
    %c0_i32_1 = arith.constant 0 : i32
    return %c0_i32, %c0_i32_0 : i32, i32
  }
  func.func @transform_2(%arg0: i32) -> (i32, i32) {
    %c0_i32 = arith.constant 0 : i32
    %c0_i32_0 = arith.constant 0 : i32
    %c0_i32_1 = arith.constant 0 : i32
    return %c0_i32, %c0_i32_0 : i32, i32
  }
}

</mosaic_0001>

<llo_original>
// kernel: tpu_custom_call.1
$region0: #{tpu_custom_call.1}
  #allocation0 [shape = 'u32[]', space=smem, size = 0x4, offset = 0x4, fixed_abs, tag = 'smem constant byte address 0x4 - core index']
  #allocation1 [shape = 'u32[144,128]{1,0:T(1,128)}', space=vmem, size = 0x12000, scoped, tag = 'internal scratch']
  %s0 = inlined_call_operand.hbm [shape: f32[8,16], index: 0, kind: input, shape index: {}]
  %s1 = inlined_call_operand.hbm [shape: f32[16,128], index: 1, kind: input, shape index: {}]
  %s2 = inlined_call_operand.hbm [shape: f32[8,128], index: 2, kind: output, shape index: {}]
  %s3 = sld [smem:[#allocation0]]
  $region30: #{tpu_custom_call.1} parent=0
    _
  %s5 = ssub.s32 1, %s3
  %s6 = scalar_select 0, %s5, %s3
  $region1: #{tpu_custom_call.1} parent=0
    #allocation2 [shape = 'u8[4096]{0}', space=vmem, size = 0x1000, scoped, tag = 'input window, operand 0, single buffered']
    #allocation3 [shape = 's32[1]{0}', space=sflag, size = 0x4, scoped, tag = 'scoped memory for tpu_custom_call.1']
    #allocation4 [shape = 's32[1]{0}', space=sflag, size = 0x4, scoped, tag = 'scoped memory for tpu_custom_call.1']
    #allocation5 [shape = 'u8[8192]{0}', space=vmem, size = 0x2000, scoped, tag = 'input window, operand 1, single buffered']
    #allocation6 [shape = 's32[1]{0}', space=sflag, size = 0x4, scoped, tag = 'scoped memory for tpu_custom_call.1']
    #allocation7 [shape = 'u8[4096]{0}', space=vmem, size = 0x1000, scoped, tag = 'output window, operand 0, single buffered']
    %7 = vsyncpa [#allocation3], 0
    %8 = vsyncpa [#allocation6], 0
    %9 = vsyncpa [#allocation4], 0
    // Predicated region
    $region2: #{tpu_custom_call.1} parent=1 // pred_check
      _
    $region3: #{tpu_custom_call.1} parent=1 // pred_check_branch
      %11 = sbr.rel (0) target = $region5
    $region4: #{tpu_custom_call.1} parent=1 // pred_region
      %s13 = ssub.s32 128, 128
      %14 = vsyncadd [#allocation3], %s13
      %s16 = sshll.u32 [#allocation2], 4
      %s17 = int_to_ptr.vmem [resolvable:$true] %s16
      %19 = dma.hbm_to_vmem [thread:$0]  %s0, 128, %s17, [#allocation3]
    $region5: #{tpu_custom_call.1} parent=1 // pred_fallthru
      _
    // Predicated region
    $region6: #{tpu_custom_call.1} parent=1 // pred_check
      _
    $region7: #{tpu_custom_call.1} parent=1 // pred_check_branch
      %21 = sbr.rel (0) target = $region9
    $region8: #{tpu_custom_call.1} parent=1 // pred_region
      %s23 = ssub.s32 256, 256
      %24 = vsyncadd [#allocation6], %s23
      %s25 = sshll.u32 [#allocation5], 4
      %s26 = int_to_ptr.vmem [resolvable:$true] %s25
      %31 = dma.hbm_to_vmem [thread:$0]  %s1, 256, %s26, [#allocation6], 128, 128, 8
    $region9: #{tpu_custom_call.1} parent=1 // pred_fallthru
      _
    // Predicated region
    $region10: #{tpu_custom_call.1} parent=1 // pred_check
      _
    $region11: #{tpu_custom_call.1} parent=1 // pred_check_branch
      %33 = sbr.rel (0) target = $region13
    $region12: #{tpu_custom_call.1} parent=1 // pred_region
      %34 = dma.done [#allocation3], 128
    $region13: #{tpu_custom_call.1} parent=1 // pred_fallthru
      _
    // Predicated region
    $region14: #{tpu_custom_call.1} parent=1 // pred_check
      _
    $region15: #{tpu_custom_call.1} parent=1 // pred_check_branch
      %36 = sbr.rel (0) target = $region17
    $region16: #{tpu_custom_call.1} parent=1 // pred_region
      %37 = dma.done [#allocation6], 256
    $region17: #{tpu_custom_call.1} parent=1 // pred_fallthru
      _
    %p38 = scmp.eq.s32.totalorder 0, 0
    // Predicated region
    $region18: #{tpu_custom_call.1} parent=1 // pred_check
      %p39 = pneg %p38
    $region19: #{tpu_custom_call.1} parent=1 // pred_check_branch
      %41 = sbr.rel (%p39) target = $region21
    $region20: #{tpu_custom_call.1} parent=1 // pred_region
      %42 = vst [vmem:[#allocation7] sm:$0xff] 0.0
    $region21: #{tpu_custom_call.1} parent=1 // pred_fallthru
      _
    %v43 = vld [vmem:[#allocation2] sm:$0xff]
    %v44 = vld [vmem:[#allocation5] sm:$0xff]
    %v45 = vld [vmem:[#allocation5 + $0x8] sm:$0xff]
    %vm46 = vcmask 130048
    %v48 = vsel %vm46, %v43, 0
    %50 = vmatprep.subr.mxu0 0.0
    %51 = vmatpush1.msra.mxu0 0.0
    %52 = vmatprep.subr.mxu0 0.0
    %53 = vmatpush1.msra.mxu0 0.0
    %54 = vmatprep.subr.mxu0 0.0
    %55 = vmatpush1.msra.mxu0 0.0
    %56 = vmatprep.subr.mxu0 0.0
    %57 = vmatpush1.msra.mxu0 0.0
    %58 = vmatprep.subr.mxu0 0.0
    %59 = vmatpush1.msra.mxu0 0.0
    %60 = vmatprep.subr.mxu0 0.0
    %61 = vmatpush1.msra.mxu0 0.0
    %62 = vmatprep.subr.mxu0 0.0
    %63 = vmatpush1.msra.mxu0 0.0
    %64 = vmatprep.subr.mxu0 0.0
    %65 = vmatpush1.msra.mxu0 0.0
    %66 = vmatprep.subr.mxu0 0.0
    %67 = vmatpush1.msra.mxu0 0.0
    %68 = vmatprep.subr.mxu0 0.0
    %69 = vmatpush1.msra.mxu0 0.0
    %70 = vmatprep.subr.mxu0 0.0
    %71 = vmatpush1.msra.mxu0 0.0
    %72 = vmatprep.subr.mxu0 0.0
    %73 = vmatpush1.msra.mxu0 0.0
    %74 = vmatprep.subr.mxu0 0.0
    %75 = vmatpush1.msra.mxu0 0.0
    %76 = vmatprep.subr.mxu0 0.0
    %77 = vmatpush1.msra.mxu0 0.0
    %78 = vmatprep.subr.mxu0 0.0
    %79 = vmatpush1.msra.mxu0 %v45
    %80 = vmatprep.subr.mxu0 0.0
    %81 = vmatpush1.msra.mxu0 %v44
    %82 = vmatprep.subr.mxu0 0.0
    %83 = vmatpush2.msra.mxu0 0.0
    %84 = vmatprep.subr.mxu0 0.0
    %85 = vmatpush2.msra.mxu0 0.0
    %86 = vmatprep.subr.mxu0 0.0
    %87 = vmatpush2.msra.mxu0 0.0
    %88 = vmatprep.subr.mxu0 0.0
    %89 = vmatpush2.msra.mxu0 0.0
    %90 = vmatprep.subr.mxu0 0.0
    %91 = vmatpush2.msra.mxu0 0.0
    %92 = vmatprep.subr.mxu0 0.0
    %93 = vmatpush2.msra.mxu0 0.0
    %94 = vmatprep.subr.mxu0 0.0
    %95 = vmatpush2.msra.mxu0 0.0
    %96 = vmatprep.subr.mxu0 0.0
    %97 = vmatpush2.msra.mxu0 0.0
    %98 = vmatprep.subr.mxu0 0.0
    %99 = vmatpush2.msra.mxu0 0.0
    %100 = vmatprep.subr.mxu0 0.0
    %101 = vmatpush2.msra.mxu0 0.0
    %102 = vmatprep.subr.mxu0 0.0
    %103 = vmatpush2.msra.mxu0 0.0
    %104 = vmatprep.subr.mxu0 0.0
    %105 = vmatpush2.msra.mxu0 0.0
    %106 = vmatprep.subr.mxu0 0.0
    %107 = vmatpush2.msra.mxu0 0.0
    %108 = vmatprep.subr.mxu0 0.0
    %109 = vmatpush2.msra.mxu0 0.0
    %110 = vmatprep.subr.mxu0 0.0
    %111 = vmatpush2.msra.mxu0 0.0
    %112 = vmatprep.subr.mxu0 0.0
    %113 = vmatpush2.msra.mxu0 0.0
    %114 = vmatprep.mubr.f32.mxu0 0.0
    %115 = vmatmul.mubr.f32.gmra.mxu0 %v48
    %v116 = vpop.f32.mrf.mxu0
    %v117 = vadd.f32 0.0, %v116
    %v118 = vpop.f32.mrf.mxu0
    %119 = vdwg.mxu0
    %v120 = vld [vmem:[#allocation7] sm:$0x1]
    %v121 = vrot.slane %v117, 4
    %v122 = vadd.f32 %v117, %v121
    %v123 = vrot.slane %v122, 2
    %v124 = vadd.f32 %v122, %v123
    %v125 = vrot.slane %v124, 1
    %v126 = vadd.f32 %v124, %v125
    %v127 = vadd.f32 %v120, %v126
    %128 = vst [vmem:[#allocation7] sm:$0x1] %v127
    %v129 = vld [vmem:[#allocation7 + $0x1] sm:$0x1]
    %v130 = vmul.f32 %v117, %v117
    %v131 = vrot.slane %v130, 4
    %v132 = vadd.f32 %v130, %v131
    %v133 = vrot.slane %v132, 2
    %v134 = vadd.f32 %v132, %v133
    %v135 = vrot.slane %v134, 1
    %v136 = vadd.f32 %v134, %v135
    %v137 = vadd.f32 %v129, %v136
    %138 = vst [vmem:[#allocation7 + $0x1] sm:$0x1] %v137
    // Predicated region
    $region22: #{tpu_custom_call.1} parent=1 // pred_check
      _
    $region23: #{tpu_custom_call.1} parent=1 // pred_check_branch
      %140 = sbr.rel (0) target = $region25
    $region24: #{tpu_custom_call.1} parent=1 // pred_region
      %s142 = ssub.s32 128, 128
      %143 = vsyncadd [#allocation4], %s142
      %s145 = sshll.u32 [#allocation7], 4
      %s146 = int_to_ptr.vmem [resolvable:$true] %s145
      %148 = dma.vmem_to_hbm [thread:$0]  %s146, 128, %s2, [#allocation4]
    $region25: #{tpu_custom_call.1} parent=1 // pred_fallthru
      _
    // Predicated region
    $region26: #{tpu_custom_call.1} parent=1 // pred_check
      _
    $region27: #{tpu_custom_call.1} parent=1 // pred_check_branch
      %150 = sbr.rel (0) target = $region29
    $region28: #{tpu_custom_call.1} parent=1 // pred_region
      %151 = dma.done [#allocation4], 128
    $region29: #{tpu_custom_call.1} parent=1 // pred_fallthru
      _
    %152 = vsyncpa [#allocation3], 1
    %153 = vsyncpa [#allocation6], 1
    %154 = vsyncpa [#allocation4], 1

</llo_original>
